<compile_context>
chip_gen: v7x
topology: tpu7x:2x2x1
jax: 0.10.0
libtpu: 0.0.40
codegen_flags: <defaults>
</compile_context>

<pallas_src>
import functools

import jax
import jax.numpy as jnp
from jax.experimental import pallas as pl
from jax.experimental.pallas import tpu as pltpu


_LANE = 128
_SUBLANE = 8


def _cmd_kernel(x1_ref, x2_ref, out_ref, *, n_moments, n_rows, d_total,
                tile_d, inv_n, mask_tail):
    # (N, tile_d) block; do moment arithmetic in f32 (inputs may be bf16).
    x1 = x1_ref[...].astype(jnp.float32)
    x2 = x2_ref[...].astype(jnp.float32)

    # Per-feature batch means -> (1, tile_d); needed for centering.
    mx1 = jnp.mean(x1, axis=0, keepdims=True)
    mx2 = jnp.mean(x2, axis=0, keepdims=True)
    sx1 = x1 - mx1
    sx2 = x2 - mx2

    # Moment 1 (mean) squared discrepancy per feature.
    dm = mx1 - mx2
    rows = [dm * dm]

    # Higher central moments k = 2..n_moments via running powers; apply the
    # 1/N mean scale once on the difference of raw sums.
    p1 = sx1
    p2 = sx2
    for _ in range(n_moments - 1):
        p1 = p1 * sx1  # == sx1 ** k
        p2 = p2 * sx2  # == sx2 ** k
        s1 = jnp.sum(p1, axis=0, keepdims=True)
        s2 = jnp.sum(p2, axis=0, keepdims=True)
        dd = (s1 - s2) * inv_n
        rows.append(dd * dd)

    # Pad to a full sublane multiple so the single output store is dense.
    for _ in range(n_rows - n_moments):
        rows.append(jnp.zeros((1, tile_d), jnp.float32))
    sq = jnp.concatenate(rows, axis=0)  # (n_rows, tile_d)

    if mask_tail:
        # Zero contributions from columns past the true feature dim (the last
        # tile of the grid may read uninitialized lanes beyond D).
        col = pl.program_id(0) * tile_d + jax.lax.broadcasted_iota(
            jnp.int32, (1, tile_d), 1)
        sq = jnp.where(col < d_total, sq, 0.0)

    # Per-moment partial sums over this tile's features, broadcast across the
    # 128 output lanes and stored as one dense block.  Finalize (sum over
    # tiles, sqrt, sum over moments) happens in the JAX wrapper.
    pm = jnp.sum(sq, axis=1, keepdims=True)  # (n_rows, 1)
    out_ref[...] = jnp.broadcast_to(pm.reshape(1, n_rows, 1),
                                    (1, n_rows, _LANE))


def cmd(x1: jax.Array, x2: jax.Array, n_moments: int,
        *, tile_d: int | None = None) -> jax.Array:
    """Central Moment Discrepancy between x1 and x2, both [N, D]."""
    assert x1.shape == x2.shape and x1.ndim == 2
    assert n_moments >= 1
    N, D = x1.shape
    itemsize = jnp.dtype(x1.dtype).itemsize
    n_rows = ((n_moments + _SUBLANE - 1) // _SUBLANE) * _SUBLANE
    d_lane = ((D + _LANE - 1) // _LANE) * _LANE

    # Generation-aware VMEM budget (v5e/v6e: 128 MiB physical; v7x: 64 MiB).
    try:
        vmem_cap = int(getattr(pltpu.get_tpu_info(), "vmem_capacity_bytes",
                               64 * 1024 * 1024))
    except Exception:  # pragma: no cover - query unavailable off-TPU
        vmem_cap = 64 * 1024 * 1024
    budget = max(16 * 1024 * 1024, vmem_cap // 2)

    def _footprint(td, n_buf):
        # Pipelined input buffers + steady-state f32 temporaries (sx1, sx2,
        # p1, p2 live across the moment loop) + stacked squared-diff rows.
        inputs = 2 * n_buf * N * td * itemsize
        temps = (4 * N + 2 * n_rows + 6) * td * 4
        outputs = 2 * n_rows * _LANE * 4
        return inputs + temps + outputs

    # Largest lane-aligned tile within budget (caller tile_d acts as a cap);
    # the whole feature dim in a single block whenever it fits.
    want = d_lane if tile_d is None else min(max(int(tile_d), _LANE), d_lane)
    want = max(_LANE, ((want + _LANE - 1) // _LANE) * _LANE)
    while want > _LANE and _footprint(want, 2) > budget:
        want = max(_LANE, ((want // 2) // _LANE) * _LANE)

    if want >= d_lane:
        # Single block equal to the full array dims: no masking needed.
        tile_d = D
        n_tiles = 1
        mask_tail = False
    else:
        tile_d = want
        n_tiles = (D + tile_d - 1) // tile_d
        mask_tail = (D % tile_d) != 0

    # Triple-buffer the inputs only when the grid is long enough for pipeline
    # ends to matter and the extra buffer still fits the budget.
    n_buf = 3 if (n_tiles >= 4 and _footprint(tile_d, 3) <= budget) else 2

    def _in_spec():
        if n_buf == 3:
            try:
                return pl.BlockSpec((N, tile_d), lambda d: (0, d),
                                    pipeline_mode=pl.Buffered(3))
            except (TypeError, AttributeError):
                pass
        return pl.BlockSpec((N, tile_d), lambda d: (0, d))

    vmem_limit = int(min(vmem_cap * 3 // 4,
                         max(32 * 1024 * 1024,
                             _footprint(tile_d, n_buf) + (8 << 20))))

    # Rough cost hint for the XLA scheduler (sqrt happens in the wrapper).
    cost = pl.CostEstimate(
        flops=int(2 * N * D * 2 * n_moments + 4 * D * n_moments),
        transcendentals=0,
        bytes_accessed=int(2 * N * D * itemsize + n_tiles * n_rows * _LANE * 4),
    )

    kernel = functools.partial(
        _cmd_kernel, n_moments=n_moments, n_rows=n_rows, d_total=D,
        tile_d=tile_d, inv_n=1.0 / N, mask_tail=mask_tail)

    parts = pl.pallas_call(
        kernel,
        out_shape=jax.ShapeDtypeStruct((n_tiles, n_rows, _LANE), jnp.float32),
        grid=(n_tiles,),
        in_specs=[_in_spec(), _in_spec()],
        out_specs=pl.BlockSpec((1, n_rows, _LANE), lambda d: (d, 0, 0)),
        compiler_params=pltpu.CompilerParams(
            dimension_semantics=("parallel",),  # tiles fully independent
            vmem_limit_bytes=vmem_limit,
        ),
        cost_estimate=cost,
    )(x1, x2)

    # Finalize: per-moment squared diffs summed over all tiles, then
    # sqrt per moment and sum over moments (tiny; done in plain JAX).
    per_moment = jnp.sum(parts[:, :n_moments, 0], axis=0)
    return jnp.sum(jnp.sqrt(per_moment))


def cmd_reference(x1, x2, n_moments):
    """Pure-JAX reference mirroring the PyTorch forward."""
    mx1 = jnp.mean(x1, axis=0)
    mx2 = jnp.mean(x2, axis=0)
    sx1 = x1 - mx1
    sx2 = x2 - mx2
    scms = jnp.sqrt(jnp.sum((mx1 - mx2) ** 2))
    for i in range(n_moments - 1):
        k = i + 2
        ss1 = jnp.mean(sx1 ** k, axis=0)
        ss2 = jnp.mean(sx2 ** k, axis=0)
        scms = scms + jnp.sqrt(jnp.sum((ss1 - ss2) ** 2))
    return scms


if __name__ == "__main__":
    key = jax.random.PRNGKey(0)
    k1, k2, k3, k4, k5, k6, k7, k8 = jax.random.split(key, 8)

    n_moments = 5

    # Case 1: small shapes consistent with the module (batch of hidden feats).
    N, D = 8, 32
    x1 = jax.random.normal(k1, (N, D), dtype=jnp.float32)
    x2 = jax.random.normal(k2, (N, D), dtype=jnp.float32) * 1.5 + 0.3
    out = jax.block_until_ready(cmd(x1, x2, n_moments))
    ref = cmd_reference(x1, x2, n_moments)
    assert jnp.allclose(out, ref, rtol=1e-5, atol=1e-5), (out, ref)

    # Case 2: D not a lane multiple + forced multi-tile grid (exercises the
    # ragged-tail in-kernel masking and the per-tile partial-sum path).
    N2, D2 = 8, 300
    y1 = jax.random.normal(k3, (N2, D2), dtype=jnp.float32)
    y2 = jax.random.normal(k4, (N2, D2), dtype=jnp.float32) * 0.7 - 0.2
    out2 = jax.block_until_ready(cmd(y1, y2, n_moments, tile_d=128))
    ref2 = cmd_reference(y1, y2, n_moments)
    assert jnp.allclose(out2, ref2, rtol=1e-5, atol=1e-5), (out2, ref2)

    # Case 3: exact multiple of tile_d (no-mask multi-tile path).
    N3, D3 = 16, 256
    z1 = jax.random.normal(k5, (N3, D3), dtype=jnp.float32)
    z2 = jax.random.normal(k6, (N3, D3), dtype=jnp.float32) * 1.2 + 0.1
    out3 = jax.block_until_ready(cmd(z1, z2, 3, tile_d=128))
    ref3 = cmd_reference(z1, z2, 3)
    assert jnp.allclose(out3, ref3, rtol=1e-5, atol=1e-5), (out3, ref3)

    # Case 4: long grid (>=4 tiles) with ragged tail -> exercises the
    # Buffered(3) input pipelining path together with masking.
    N4, D4 = 8, 650
    w1 = jax.random.normal(k7, (N4, D4), dtype=jnp.float32)
    w2 = jax.random.normal(k8, (N4, D4), dtype=jnp.float32) * 0.9 + 0.05
    out4 = jax.block_until_ready(cmd(w1, w2, n_moments, tile_d=128))
    ref4 = cmd_reference(w1, w2, n_moments)
    assert jnp.allclose(out4, ref4, rtol=1e-5, atol=1e-5), (out4, ref4)

    print("KERNEL_OK")
</pallas_src>

<mosaic_0001>
module attributes {stable_mosaic.version = 11 : i64} {
  func.func @_cmd_kernel(%arg0: i32, %arg1: memref<8x32xf32, #tpu.memory_space<vmem>>, %arg2: memref<8x32xf32, #tpu.memory_space<vmem>>, %arg3: memref<1x8x128xf32, #tpu.memory_space<vmem>>) attributes {dimension_semantics = [#tpu.dimension_semantics<parallel>], iteration_bounds = array<i64: 1>, scalar_prefetch = 0 : i64, scratch_operands = 0 : i64, tpu.core_type = #tpu.core_type<tc>, window_params = [{transform_indices = @transform_0, window_bounds = array<i64: 8, 32>}, {transform_indices = @transform_1, window_bounds = array<i64: 8, 32>}, {transform_indices = @transform_2, window_bounds = array<i64: 1, 8, 128>}]} {
    %c0 = arith.constant 0 : index
    %c0_0 = arith.constant 0 : index
    %0 = vector.load %arg1[%c0, %c0_0] : memref<8x32xf32, #tpu.memory_space<vmem>>, vector<8x32xf32>
    %c0_1 = arith.constant 0 : index
    %c0_2 = arith.constant 0 : index
    %1 = vector.load %arg2[%c0_1, %c0_2] : memref<8x32xf32, #tpu.memory_space<vmem>>, vector<8x32xf32>
    %cst = arith.constant dense<0.000000e+00> : vector<32xf32>
    %2 = vector.multi_reduction <add>, %0, %cst [0] : vector<8x32xf32> to vector<32xf32>
    %3 = vector.shape_cast %2 : vector<32xf32> to vector<1x32xf32>
    %cst_3 = arith.constant 8.000000e+00 : f32
    %4 = vector.broadcast %cst_3 : f32 to vector<1x32xf32>
    %5 = arith.divf %3, %4 : vector<1x32xf32>
    %cst_4 = arith.constant dense<0.000000e+00> : vector<32xf32>
    %6 = vector.multi_reduction <add>, %1, %cst_4 [0] : vector<8x32xf32> to vector<32xf32>
    %7 = vector.shape_cast %6 : vector<32xf32> to vector<1x32xf32>
    %cst_5 = arith.constant 8.000000e+00 : f32
    %8 = vector.broadcast %cst_5 : f32 to vector<1x32xf32>
    %9 = arith.divf %7, %8 : vector<1x32xf32>
    %10 = vector.broadcast %5 : vector<1x32xf32> to vector<8x32xf32>
    %11 = arith.subf %0, %10 : vector<8x32xf32>
    %12 = vector.broadcast %9 : vector<1x32xf32> to vector<8x32xf32>
    %13 = arith.subf %1, %12 : vector<8x32xf32>
    %14 = arith.subf %5, %9 : vector<1x32xf32>
    %15 = arith.mulf %14, %14 : vector<1x32xf32>
    %16 = arith.mulf %11, %11 : vector<8x32xf32>
    %17 = arith.mulf %13, %13 : vector<8x32xf32>
    %cst_6 = arith.constant dense<0.000000e+00> : vector<32xf32>
    %18 = vector.multi_reduction <add>, %16, %cst_6 [0] : vector<8x32xf32> to vector<32xf32>
    %19 = vector.shape_cast %18 : vector<32xf32> to vector<1x32xf32>
    %cst_7 = arith.constant dense<0.000000e+00> : vector<32xf32>
    %20 = vector.multi_reduction <add>, %17, %cst_7 [0] : vector<8x32xf32> to vector<32xf32>
    %21 = vector.shape_cast %20 : vector<32xf32> to vector<1x32xf32>
    %22 = arith.subf %19, %21 : vector<1x32xf32>
    %cst_8 = arith.constant 1.250000e-01 : f32
    %23 = vector.broadcast %cst_8 : f32 to vector<1x32xf32>
    %24 = arith.mulf %22, %23 : vector<1x32xf32>
    %25 = arith.mulf %24, %24 : vector<1x32xf32>
    %26 = arith.mulf %16, %11 : vector<8x32xf32>
    %27 = arith.mulf %17, %13 : vector<8x32xf32>
    %cst_9 = arith.constant dense<0.000000e+00> : vector<32xf32>
    %28 = vector.multi_reduction <add>, %26, %cst_9 [0] : vector<8x32xf32> to vector<32xf32>
    %29 = vector.shape_cast %28 : vector<32xf32> to vector<1x32xf32>
    %cst_10 = arith.constant dense<0.000000e+00> : vector<32xf32>
    %30 = vector.multi_reduction <add>, %27, %cst_10 [0] : vector<8x32xf32> to vector<32xf32>
    %31 = vector.shape_cast %30 : vector<32xf32> to vector<1x32xf32>
    %32 = arith.subf %29, %31 : vector<1x32xf32>
    %cst_11 = arith.constant 1.250000e-01 : f32
    %33 = vector.broadcast %cst_11 : f32 to vector<1x32xf32>
    %34 = arith.mulf %32, %33 : vector<1x32xf32>
    %35 = arith.mulf %34, %34 : vector<1x32xf32>
    %36 = arith.mulf %26, %11 : vector<8x32xf32>
    %37 = arith.mulf %27, %13 : vector<8x32xf32>
    %cst_12 = arith.constant dense<0.000000e+00> : vector<32xf32>
    %38 = vector.multi_reduction <add>, %36, %cst_12 [0] : vector<8x32xf32> to vector<32xf32>
    %39 = vector.shape_cast %38 : vector<32xf32> to vector<1x32xf32>
    %cst_13 = arith.constant dense<0.000000e+00> : vector<32xf32>
    %40 = vector.multi_reduction <add>, %37, %cst_13 [0] : vector<8x32xf32> to vector<32xf32>
    %41 = vector.shape_cast %40 : vector<32xf32> to vector<1x32xf32>
    %42 = arith.subf %39, %41 : vector<1x32xf32>
    %cst_14 = arith.constant 1.250000e-01 : f32
    %43 = vector.broadcast %cst_14 : f32 to vector<1x32xf32>
    %44 = arith.mulf %42, %43 : vector<1x32xf32>
    %45 = arith.mulf %44, %44 : vector<1x32xf32>
    %46 = arith.mulf %36, %11 : vector<8x32xf32>
    %47 = arith.mulf %37, %13 : vector<8x32xf32>
    %cst_15 = arith.constant dense<0.000000e+00> : vector<32xf32>
    %48 = vector.multi_reduction <add>, %46, %cst_15 [0] : vector<8x32xf32> to vector<32xf32>
    %49 = vector.shape_cast %48 : vector<32xf32> to vector<1x32xf32>
    %cst_16 = arith.constant dense<0.000000e+00> : vector<32xf32>
    %50 = vector.multi_reduction <add>, %47, %cst_16 [0] : vector<8x32xf32> to vector<32xf32>
    %51 = vector.shape_cast %50 : vector<32xf32> to vector<1x32xf32>
    %52 = arith.subf %49, %51 : vector<1x32xf32>
    %cst_17 = arith.constant 1.250000e-01 : f32
    %53 = vector.broadcast %cst_17 : f32 to vector<1x32xf32>
    %54 = arith.mulf %52, %53 : vector<1x32xf32>
    %55 = arith.mulf %54, %54 : vector<1x32xf32>
    %cst_18 = arith.constant 0.000000e+00 : f32
    %56 = vector.broadcast %cst_18 : f32 to vector<1x32xf32>
    %cst_19 = arith.constant 0.000000e+00 : f32
    %57 = vector.broadcast %cst_19 : f32 to vector<1x32xf32>
    %cst_20 = arith.constant 0.000000e+00 : f32
    %58 = vector.broadcast %cst_20 : f32 to vector<1x32xf32>
    %59 = tpu.concatenate %15, %25, %35, %45, %55, %56, %57, %58 in 0 : vector<1x32xf32>, vector<1x32xf32>, vector<1x32xf32>, vector<1x32xf32>, vector<1x32xf32>, vector<1x32xf32>, vector<1x32xf32>, vector<1x32xf32> -> vector<8x32xf32>
    %cst_21 = arith.constant dense<0.000000e+00> : vector<8xf32>
    %60 = vector.multi_reduction <add>, %59, %cst_21 [1] : vector<8x32xf32> to vector<8xf32>
    %61 = vector.shape_cast %60 : vector<8xf32> to vector<8x1xf32>
    %62 = vector.shape_cast %61 : vector<8x1xf32> to vector<1x8x1xf32>
    %63 = vector.shape_cast %62 : vector<1x8x1xf32> to vector<1x8x1xf32>
    %64 = vector.broadcast %63 : vector<1x8x1xf32> to vector<1x8x128xf32>
    %c0_22 = arith.constant 0 : index
    %c0_23 = arith.constant 0 : index
    %c0_24 = arith.constant 0 : index
    %65 = vector.load %arg3[%c0_22, %c0_23, %c0_24] : memref<1x8x128xf32, #tpu.memory_space<vmem>>, vector<1x8x128xf32>
    tpu.vector_store %arg3[%c0_22, %c0_23, %c0_24], %64 {strides = array<i32>} : memref<1x8x128xf32, #tpu.memory_space<vmem>>, vector<1x8x128xf32>,
    return
  }
  func.func @transform_0(%arg0: i32) -> (i32, i32) {
    %c0_i32 = arith.constant 0 : i32
    %c0_i32_0 = arith.constant 0 : i32
    return %c0_i32, %arg0 : i32, i32
  }
  func.func @transform_1(%arg0: i32) -> (i32, i32) {
    %c0_i32 = arith.constant 0 : i32
    %c0_i32_0 = arith.constant 0 : i32
    return %c0_i32, %arg0 : i32, i32
  }
  func.func @transform_2(%arg0: i32) -> (i32, i32, i32) {
    %c0_i32 = arith.constant 0 : i32
    %c0_i32_0 = arith.constant 0 : i32
    %c0_i32_1 = arith.constant 0 : i32
    return %arg0, %c0_i32, %c0_i32_0 : i32, i32, i32
  }
}

</mosaic_0001>

<llo_original>
// kernel: tpu_custom_call.1
$region0: #{tpu_custom_call.1}
  #allocation0 [shape = 'u32[]', space=smem, size = 0x4, offset = 0x4, fixed_abs, tag = 'smem constant byte address 0x4 - core index']
  #allocation1 [shape = 'u32[144,128]{1,0:T(1,128)}', space=vmem, size = 0x12000, scoped, tag = 'internal scratch']
  %s0 = inlined_call_operand.hbm [shape: f32[8,32], index: 0, kind: input, shape index: {}]
  %s1 = inlined_call_operand.hbm [shape: f32[8,32], index: 1, kind: input, shape index: {}]
  %s2 = inlined_call_operand.hbm [shape: f32[1,8,128], index: 2, kind: output, shape index: {}]
  %s3 = sld [smem:[#allocation0]]
  $region26: #{tpu_custom_call.1} parent=0
    _
  %s5 = ssub.s32 1, %s3
  %s6 = scalar_select 0, %s5, %s3
  $region1: #{tpu_custom_call.1} parent=0
    #allocation2 [shape = 'u8[4096]{0}', space=vmem, size = 0x1000, scoped, tag = 'input window, operand 0, single buffered']
    #allocation3 [shape = 's32[1]{0}', space=sflag, size = 0x4, scoped, tag = 'scoped memory for tpu_custom_call.1']
    #allocation4 [shape = 's32[1]{0}', space=sflag, size = 0x4, scoped, tag = 'scoped memory for tpu_custom_call.1']
    #allocation5 [shape = 'u8[4096]{0}', space=vmem, size = 0x1000, scoped, tag = 'input window, operand 1, single buffered']
    #allocation6 [shape = 's32[1]{0}', space=sflag, size = 0x4, scoped, tag = 'scoped memory for tpu_custom_call.1']
    #allocation7 [shape = 'u8[4096]{0}', space=vmem, size = 0x1000, scoped, tag = 'output window, operand 0, single buffered']
    %7 = vsyncpa [#allocation3], 0
    %8 = vsyncpa [#allocation6], 0
    %9 = vsyncpa [#allocation4], 0
    // Predicated region
    $region2: #{tpu_custom_call.1} parent=1 // pred_check
      _
    $region3: #{tpu_custom_call.1} parent=1 // pred_check_branch
      %11 = sbr.rel (0) target = $region5
    $region4: #{tpu_custom_call.1} parent=1 // pred_region
      %s13 = ssub.s32 128, 128
      %14 = vsyncadd [#allocation3], %s13
      %s16 = sshll.u32 [#allocation2], 4
      %s17 = int_to_ptr.vmem [resolvable:$true] %s16
      %19 = dma.hbm_to_vmem [thread:$0]  %s0, 128, %s17, [#allocation3]
    $region5: #{tpu_custom_call.1} parent=1 // pred_fallthru
      _
    // Predicated region
    $region6: #{tpu_custom_call.1} parent=1 // pred_check
      _
    $region7: #{tpu_custom_call.1} parent=1 // pred_check_branch
      %21 = sbr.rel (0) target = $region9
    $region8: #{tpu_custom_call.1} parent=1 // pred_region
      %s23 = ssub.s32 128, 128
      %24 = vsyncadd [#allocation6], %s23
      %s26 = sshll.u32 [#allocation5], 4
      %s27 = int_to_ptr.vmem [resolvable:$true] %s26
      %29 = dma.hbm_to_vmem [thread:$0]  %s1, 128, %s27, [#allocation6]
    $region9: #{tpu_custom_call.1} parent=1 // pred_fallthru
      _
    // Predicated region
    $region10: #{tpu_custom_call.1} parent=1 // pred_check
      _
    $region11: #{tpu_custom_call.1} parent=1 // pred_check_branch
      %31 = sbr.rel (0) target = $region13
    $region12: #{tpu_custom_call.1} parent=1 // pred_region
      %32 = dma.done [#allocation3], 128
    $region13: #{tpu_custom_call.1} parent=1 // pred_fallthru
      _
    // Predicated region
    $region14: #{tpu_custom_call.1} parent=1 // pred_check
      _
    $region15: #{tpu_custom_call.1} parent=1 // pred_check_branch
      %34 = sbr.rel (0) target = $region17
    $region16: #{tpu_custom_call.1} parent=1 // pred_region
      %35 = dma.done [#allocation6], 128
    $region17: #{tpu_custom_call.1} parent=1 // pred_fallthru
      _
    %v36 = vld [vmem:[#allocation2] sm:$0xff]
    %v37 = vld [vmem:[#allocation5] sm:$0xff]
    %vm38 = vcmask 261120
    %v39 = vsel %vm38, %v36, 0.0
    %v40 = vrot.slane %v39, 4
    %v41 = vadd.f32 %v39, %v40
    %v42 = vrot.slane %v41, 2
    %v43 = vadd.f32 %v41, %v42
    %v44 = vrot.slane %v43, 1
    %v45 = vadd.f32 %v43, %v44
    %v46 = vrcp.pop 8.0
    %v47 = vmul.f32 %v45, %v46
    %v48 = vsel %vm38, %v37, 0.0
    %v49 = vrot.slane %v48, 4
    %v50 = vadd.f32 %v48, %v49
    %v51 = vrot.slane %v50, 2
    %v52 = vadd.f32 %v50, %v51
    %v53 = vrot.slane %v52, 1
    %v54 = vadd.f32 %v52, %v53
    %v55 = vmul.f32 %v54, %v46
    %v56 = vsub.f32 %v36, %v47
    %v57 = vsub.f32 %v37, %v55
    %v58 = vsub.f32 %v47, %v55
    %v59 = vmul.f32 %v58, %v58
    %v60 = vmul.f32 %v56, %v56
    %v61 = vmul.f32 %v57, %v57
    %v62 = vsel %vm38, %v60, 0.0
    %v63 = vrot.slane %v62, 4
    %v64 = vadd.f32 %v62, %v63
    %v65 = vrot.slane %v64, 2
    %v66 = vadd.f32 %v64, %v65
    %v67 = vrot.slane %v66, 1
    %v68 = vadd.f32 %v66, %v67
    %v69 = vsel %vm38, %v61, 0.0
    %v70 = vrot.slane %v69, 4
    %v71 = vadd.f32 %v69, %v70
    %v72 = vrot.slane %v71, 2
    %v73 = vadd.f32 %v71, %v72
    %v74 = vrot.slane %v73, 1
    %v75 = vadd.f32 %v73, %v74
    %v76 = vsub.f32 %v68, %v75
    %v77 = vmul.f32 %v76, 0.125
    %v78 = vmul.f32 %v77, %v77
    %v79 = vmul.f32 %v60, %v56
    %v80 = vmul.f32 %v61, %v57
    %v81 = vsel %vm38, %v79, 0.0
    %v82 = vrot.slane %v81, 4
    %v83 = vadd.f32 %v81, %v82
    %v84 = vrot.slane %v83, 2
    %v85 = vadd.f32 %v83, %v84
    %v86 = vrot.slane %v85, 1
    %v87 = vadd.f32 %v85, %v86
    %v88 = vsel %vm38, %v80, 0.0
    %v89 = vrot.slane %v88, 4
    %v90 = vadd.f32 %v88, %v89
    %v91 = vrot.slane %v90, 2
    %v92 = vadd.f32 %v90, %v91
    %v93 = vrot.slane %v92, 1
    %v94 = vadd.f32 %v92, %v93
    %v95 = vsub.f32 %v87, %v94
    %v96 = vmul.f32 %v95, 0.125
    %v97 = vmul.f32 %v96, %v96
    %v98 = vmul.f32 %v79, %v56
    %v99 = vmul.f32 %v80, %v57
    %v100 = vsel %vm38, %v98, 0.0
    %v101 = vrot.slane %v100, 4
    %v102 = vadd.f32 %v100, %v101
    %v103 = vrot.slane %v102, 2
    %v104 = vadd.f32 %v102, %v103
    %v105 = vrot.slane %v104, 1
    %v106 = vadd.f32 %v104, %v105
    %v107 = vsel %vm38, %v99, 0.0
    %v108 = vrot.slane %v107, 4
    %v109 = vadd.f32 %v107, %v108
    %v110 = vrot.slane %v109, 2
    %v111 = vadd.f32 %v109, %v110
    %v112 = vrot.slane %v111, 1
    %v113 = vadd.f32 %v111, %v112
    %v114 = vsub.f32 %v106, %v113
    %v115 = vmul.f32 %v114, 0.125
    %v116 = vmul.f32 %v115, %v115
    %v117 = vmul.f32 %v98, %v56
    %v118 = vmul.f32 %v99, %v57
    %v119 = vsel %vm38, %v117, 0.0
    %v120 = vrot.slane %v119, 4
    %v121 = vadd.f32 %v119, %v120
    %v122 = vrot.slane %v121, 2
    %v123 = vadd.f32 %v121, %v122
    %v124 = vrot.slane %v123, 1
    %v125 = vadd.f32 %v123, %v124
    %v126 = vsel %vm38, %v118, 0.0
    %v127 = vrot.slane %v126, 4
    %v128 = vadd.f32 %v126, %v127
    %v129 = vrot.slane %v128, 2
    %v130 = vadd.f32 %v128, %v129
    %v131 = vrot.slane %v130, 1
    %v132 = vadd.f32 %v130, %v131
    %v133 = vsub.f32 %v125, %v132
    %v134 = vmul.f32 %v133, 0.125
    %v135 = vmul.f32 %v134, %v134
    %vm136 = vcmask 1040384
    %v137 = vsel %vm136, %v59, %v78
    %vm138 = vcmask 1041408
    %v139 = vsel %vm138, %v137, %v97
    %vm140 = vcmask 1042432
    %v141 = vsel %vm140, %v139, %v116
    %vm142 = vcmask 1043456
    %v143 = vsel %vm142, %v141, %v135
    %vm144 = vcmask 1044480
    %v145 = vsel %vm144, %v143, 0.0
    %vm146 = vcmask 1045504
    %v147 = vsel %vm146, %v145, 0.0
    %vm148 = vcmask 1046528
    %v149 = vsel %vm148, %v147, 0.0
    %v150 = vsel %vm38, %v149, 0.0
    %151 = vadd.xlane.f32.xlu0 %v150
    %v152 = vpop.xlane.xlu0 %151
    %153 = vst [vmem:[#allocation7] sm:$0xff] %v152
    // Predicated region
    $region18: #{tpu_custom_call.1} parent=1 // pred_check
      _
    $region19: #{tpu_custom_call.1} parent=1 // pred_check_branch
      %155 = sbr.rel (0) target = $region21
    $region20: #{tpu_custom_call.1} parent=1 // pred_region
      %s157 = ssub.s32 128, 128
      %158 = vsyncadd [#allocation4], %s157
      %s160 = sshll.u32 [#allocation7], 4
      %s161 = int_to_ptr.vmem [resolvable:$true] %s160
      %163 = dma.vmem_to_hbm [thread:$0]  %s161, 128, %s2, [#allocation4]
    $region21: #{tpu_custom_call.1} parent=1 // pred_fallthru
      _
    // Predicated region
    $region22: #{tpu_custom_call.1} parent=1 // pred_check
      _
    $region23: #{tpu_custom_call.1} parent=1 // pred_check_branch
      %165 = sbr.rel (0) target = $region25
    $region24: #{tpu_custom_call.1} parent=1 // pred_region
      %166 = dma.done [#allocation4], 128
    $region25: #{tpu_custom_call.1} parent=1 // pred_fallthru
      _
    %167 = vsyncpa [#allocation3], 1
    %168 = vsyncpa [#allocation6], 1
    %169 = vsyncpa [#allocation4], 1

</llo_original>
